<compile_context>
chip_gen: v7x
topology: tpu7x:2x2x1
jax: 0.10.0
libtpu: 0.0.40
codegen_flags: <defaults>
</compile_context>

<pallas_src>
import math
from functools import partial

import jax
import jax.numpy as jnp
from jax.experimental import pallas as pl
from jax.experimental.pallas import tpu as pltpu


_VMEM_LIMIT = 32 * 1024 * 1024          # explicit: v5e scoped default is only 16 MiB
_GELU_C = math.sqrt(2.0 / math.pi)
_LN_EPS = 1e-5                          # PyTorch nn.LayerNorm default


def _tile(dim, base):
    """Largest power-of-two tile <= base that divides dim (else dim itself)."""
    if dim <= base:
        return dim
    t = base
    while t >= 8:
        if dim % t == 0:
            return t
        t //= 2
    return dim


# ----------------------------------------------------------------------------
# Fused linears: single MXU dot (K collapsed) + epilogue, grid (M/tm, N/tn)
# ----------------------------------------------------------------------------

def _mm_kernel(x_ref, w_ref, o_ref):
    acc = jnp.dot(x_ref[...], w_ref[...], preferred_element_type=jnp.float32)
    o_ref[...] = acc.astype(o_ref.dtype)


def _mm_bias_kernel(x_ref, w_ref, b_ref, o_ref):
    acc = jnp.dot(x_ref[...], w_ref[...], preferred_element_type=jnp.float32)
    o_ref[...] = (acc + b_ref[...]).astype(o_ref.dtype)


def _mm_bias_gelu_kernel(x_ref, w_ref, b_ref, o_ref):
    acc = jnp.dot(x_ref[...], w_ref[...], preferred_element_type=jnp.float32)
    h = acc + b_ref[...]
    g = 0.5 * h * (1.0 + jnp.tanh(_GELU_C * (h + 0.044715 * h * h * h)))
    o_ref[...] = g.astype(o_ref.dtype)


def fused_linear(x, w, bias=None, gelu=False,
                 out_dtype=jnp.bfloat16, tm=512, tn=512):
    """y = act(x @ w [+ bias]); K is not tiled (fits VMEM for all GPT linears)."""
    M, K = x.shape
    K2, N = w.shape
    assert K == K2
    tm = min(M, tm)
    tn = min(N, tn)
    grid = (pl.cdiv(M, tm), pl.cdiv(N, tn))

    # x block index constant over j -> activation tile resident across the N sweep.
    in_specs = [pl.BlockSpec((tm, K), lambda i, j: (i, 0)),
                pl.BlockSpec((K, tn), lambda i, j: (0, j))]
    args = [x, w]
    if bias is not None:
        in_specs.append(pl.BlockSpec((1, tn), lambda i, j: (0, j)))
        args.append(bias.reshape(1, N))
        kernel = _mm_bias_gelu_kernel if gelu else _mm_bias_kernel
    else:
        kernel = _mm_kernel

    return pl.pallas_call(
        kernel,
        out_shape=jax.ShapeDtypeStruct((M, N), out_dtype),
        grid=grid,
        in_specs=in_specs,
        out_specs=pl.BlockSpec((tm, tn), lambda i, j: (i, j)),
        compiler_params=pltpu.CompilerParams(
            dimension_semantics=("parallel", "parallel"),
            vmem_limit_bytes=_VMEM_LIMIT),
    )(*args)


# ----------------------------------------------------------------------------
# Projection + residual add + LayerNorm, fused in one epilogue (tn == C)
#   outputs: (x_new f32 residual stream, LN(x_new) bf16 for the next matmul)
# ----------------------------------------------------------------------------

def _proj_res_ln_kernel(x_ref, w_ref, b_ref, r_ref, g_ref, bt_ref,
                        xo_ref, ho_ref):
    acc = jnp.dot(x_ref[...], w_ref[...], preferred_element_type=jnp.float32)
    xnew = acc + b_ref[...] + r_ref[...].astype(jnp.float32)
    xo_ref[...] = xnew.astype(xo_ref.dtype)
    mean = jnp.mean(xnew, axis=-1, keepdims=True)
    xc = xnew - mean
    var = jnp.mean(xc * xc, axis=-1, keepdims=True)
    inv = jax.lax.rsqrt(var + _LN_EPS)
    ho_ref[...] = (xc * inv * g_ref[...] + bt_ref[...]).astype(ho_ref.dtype)


def fused_proj_residual_ln(x, w, bias, residual, gamma, beta, *, tm=512,
                           res_dtype=jnp.float32, ln_dtype=jnp.bfloat16):
    M, K = x.shape
    K2, C = w.shape
    assert K == K2 and residual.shape == (M, C)
    tm = min(M, tm)
    grid = (pl.cdiv(M, tm),)

    return pl.pallas_call(
        _proj_res_ln_kernel,
        out_shape=(jax.ShapeDtypeStruct((M, C), res_dtype),
                   jax.ShapeDtypeStruct((M, C), ln_dtype)),
        grid=grid,
        in_specs=[pl.BlockSpec((tm, K), lambda i: (i, 0)),
                  pl.BlockSpec((K, C), lambda i: (0, 0)),
                  pl.BlockSpec((1, C), lambda i: (0, 0)),
                  pl.BlockSpec((tm, C), lambda i: (i, 0)),
                  pl.BlockSpec((1, C), lambda i: (0, 0)),
                  pl.BlockSpec((1, C), lambda i: (0, 0))],
        out_specs=(pl.BlockSpec((tm, C), lambda i: (i, 0)),
                   pl.BlockSpec((tm, C), lambda i: (i, 0))),
        compiler_params=pltpu.CompilerParams(
            dimension_semantics=("parallel",),
            vmem_limit_bytes=_VMEM_LIMIT),
    )(x, w, bias.reshape(1, C), residual, gamma.reshape(1, C),
      beta.reshape(1, C))


# ----------------------------------------------------------------------------
# Standalone LayerNorm (only used for the very first ln_1)
# ----------------------------------------------------------------------------

def _layernorm_kernel(x_ref, g_ref, b_ref, o_ref):
    x = x_ref[...].astype(jnp.float32)
    mean = jnp.mean(x, axis=-1, keepdims=True)
    xc = x - mean
    var = jnp.mean(xc * xc, axis=-1, keepdims=True)
    inv = jax.lax.rsqrt(var + _LN_EPS)
    o_ref[...] = (xc * inv * g_ref[...] + b_ref[...]).astype(o_ref.dtype)


def layernorm(x, g, b, out_dtype=jnp.bfloat16, tm=1024):
    M, C = x.shape
    tm = min(M, tm)
    return pl.pallas_call(
        _layernorm_kernel,
        out_shape=jax.ShapeDtypeStruct((M, C), out_dtype),
        grid=(pl.cdiv(M, tm),),
        in_specs=[pl.BlockSpec((tm, C), lambda i: (i, 0)),
                  pl.BlockSpec((1, C), lambda i: (0, 0)),
                  pl.BlockSpec((1, C), lambda i: (0, 0))],
        out_specs=pl.BlockSpec((tm, C), lambda i: (i, 0)),
        compiler_params=pltpu.CompilerParams(
            dimension_semantics=("parallel",),
            vmem_limit_bytes=_VMEM_LIMIT),
    )(x, g.reshape(1, C), b.reshape(1, C))


# ----------------------------------------------------------------------------
# Flash-style causal attention over the [B, T, 3, H, D] QKV buffer
#   - grid (B, q_tiles, kv_tiles), online softmax scratch (m, l, acc)
#   - kv DMAs above the causal diagonal are skipped by clamping the kv block
#     index (unchanged block index => no re-DMA); compute skipped via pl.when
#   - lane-dense (tq, C) output written per head column range
# ----------------------------------------------------------------------------

def _flash_attn_kernel(q_ref, k_ref, v_ref, o_ref, m_ref, l_ref, acc_ref,
                       *, scale, tq, tk, num_heads, head_dim):
    qi = pl.program_id(1)
    ki = pl.program_id(2)

    @pl.when(ki == 0)
    def _():
        m_ref[...] = jnp.full_like(m_ref, -jnp.inf)
        l_ref[...] = jnp.zeros_like(l_ref)
        acc_ref[...] = jnp.zeros_like(acc_ref)

    q_start = qi * tq
    k_start = ki * tk

    # Skip KV tiles that lie entirely above the causal diagonal (their DMA was
    # already suppressed by the clamped index_map).
    @pl.when(k_start <= q_start + tq - 1)
    def _():
        q = q_ref[...]                                    # [tq, H, D] bf16
        k = k_ref[...]                                    # [tk, H, D]
        v = v_ref[...]                                    # [tk, H, D]
        # scores: contract D, batch over heads -> [H, tq, tk]  (no k.T relayout)
        s = jax.lax.dot_general(
            q, k, (((2,), (2,)), ((1,), (1,))),
            preferred_element_type=jnp.float32) * scale
        rows = q_start + jax.lax.broadcasted_iota(jnp.int32, (tq, tk), 0)
        cols = k_start + jax.lax.broadcasted_iota(jnp.int32, (tq, tk), 1)
        s = jnp.where((cols <= rows)[None, :, :], s, -jnp.inf)

        m_prev = m_ref[...]                               # [H, tq, 1]
        m_new = jnp.maximum(m_prev, jnp.max(s, axis=-1, keepdims=True))
        alpha = jnp.exp(m_prev - m_new)
        p = jnp.exp(s - m_new)                            # [H, tq, tk] f32
        l_ref[...] = alpha * l_ref[...] + jnp.sum(p, axis=-1, keepdims=True)
        # p @ v: contract tk, batch over heads -> [H, tq, D]
        pv = jax.lax.dot_general(
            p.astype(v.dtype), v, (((2,), (0,)), ((0,), (1,))),
            preferred_element_type=jnp.float32)
        acc_ref[...] = alpha * acc_ref[...] + pv
        m_ref[...] = m_new

    @pl.when(ki == pl.num_programs(2) - 1)
    def _():
        inv_l = pl.reciprocal(l_ref[...], approx=True)     # [H, tq, 1]
        # Lane-dense (tq, C) output: write each head's column range.
        for h in range(num_heads):
            o_ref[:, h * head_dim:(h + 1) * head_dim] = (
                acc_ref[h] * inv_l[h]).astype(o_ref.dtype)


def causal_flash_attention(qkv, n_head, tq=256, tk=256):
    """qkv: [B, T, 3, H, D] bf16 -> y: [B, T, C] bf16 (causal SDPA)."""
    B, T, three, H, D = qkv.shape
    assert three == 3 and H == n_head
    C = H * D
    tq = _tile(T, tq)
    tk = _tile(T, tk)
    scale = 1.0 / math.sqrt(D)

    def q_map(b, qi, ki):
        return (b, qi, 0, 0, 0)

    def kv_map(slot):
        def _map(b, qi, ki):
            # Last valid kv tile for this q tile; masked steps re-use it so the
            # pipeline issues no DMA for fully-masked tiles.
            kmax = (qi * tq + tq - 1) // tk
            return (b, jnp.minimum(ki, kmax), slot, 0, 0)
        return _map

    kernel = partial(_flash_attn_kernel, scale=scale, tq=tq, tk=tk,
                     num_heads=H, head_dim=D)
    return pl.pallas_call(
        kernel,
        out_shape=jax.ShapeDtypeStruct((B, T, C), jnp.bfloat16),
        grid=(B, T // tq, T // tk),
        in_specs=[
            pl.BlockSpec((None, tq, None, H, D), q_map),
            pl.BlockSpec((None, tk, None, H, D), kv_map(1)),
            pl.BlockSpec((None, tk, None, H, D), kv_map(2)),
        ],
        out_specs=pl.BlockSpec((None, tq, C), lambda b, qi, ki: (b, qi, 0)),
        scratch_shapes=[pltpu.VMEM((H, tq, 1), jnp.float32),   # m
                        pltpu.VMEM((H, tq, 1), jnp.float32),   # l
                        pltpu.VMEM((H, tq, D), jnp.float32)],  # acc
        compiler_params=pltpu.CompilerParams(
            dimension_semantics=("parallel", "parallel", "arbitrary"),
            vmem_limit_bytes=_VMEM_LIMIT),
    )(qkv, qkv, qkv)


# ----------------------------------------------------------------------------
# GPT model (params + forward)
# ----------------------------------------------------------------------------

def init_params(key, *, vocab_size, block_size, n_embd, n_layer, n_head):
    std = 0.02
    proj_std = 0.02 * (2 * n_layer) ** -0.5     # NANOGPT_SCALE_INIT
    C = n_embd

    def normal(k, shape, s):
        return s * jax.random.normal(k, shape, dtype=jnp.float32)

    keys = iter(jax.random.split(key, 6 * n_layer + 4))
    wte = normal(next(keys), (vocab_size, C), std)

    # Tied lm_head: transpose/cast once, pad the vocab axis to a multiple of 128
    # so the logits store is never lane-masked.
    v_pad = ((vocab_size + 127) // 128) * 128
    lm_head_w = wte.T.astype(jnp.bfloat16)
    if v_pad != vocab_size:
        lm_head_w = jnp.pad(lm_head_w, ((0, 0), (0, v_pad - vocab_size)))

    params = {
        "wte": wte.astype(jnp.bfloat16),              # bf16 gather (bandwidth)
        "lm_head_w": lm_head_w,                       # (C, v_pad) bf16
        "wpe": normal(next(keys), (block_size, C), std),
        "lnf_g": jnp.ones((C,), jnp.float32),
        "lnf_b": jnp.zeros((C,), jnp.float32),
        "h": [],
        "n_head": n_head,
        "n_embd": C,
        "vocab_size": vocab_size,
        "block_size": block_size,
    }
    for _ in range(n_layer):
        layer = {
            "ln1_g": jnp.ones((C,), jnp.float32),
            "ln1_b": jnp.zeros((C,), jnp.float32),
            "attn_w": normal(next(keys), (C, 3 * C), std).astype(jnp.bfloat16),
            "attn_b": jnp.zeros((3 * C,), jnp.float32),
            "aproj_w": normal(next(keys), (C, C), proj_std).astype(jnp.bfloat16),
            "aproj_b": jnp.zeros((C,), jnp.float32),
            "ln2_g": jnp.ones((C,), jnp.float32),
            "ln2_b": jnp.zeros((C,), jnp.float32),
            "fc_w": normal(next(keys), (C, 4 * C), std).astype(jnp.bfloat16),
            "fc_b": jnp.zeros((4 * C,), jnp.float32),
            "mproj_w": normal(next(keys), (4 * C, C), proj_std).astype(jnp.bfloat16),
            "mproj_b": jnp.zeros((C,), jnp.float32),
        }
        params["h"].append(layer)
    return params


def gpt_forward(params, idx):
    """Returns (logits, loss=None); mirrors GPT.forward with targets=None."""
    B, T = idx.shape
    assert T <= params["block_size"]
    C = params["n_embd"]
    H = params["n_head"]
    D = C // H
    M = B * T
    V = params["vocab_size"]

    tok_emb = params["wte"][idx].astype(jnp.float32)       # (B, T, C) gather (glue)
    pos_emb = params["wpe"][:T]                            # (T, C) f32
    x = (tok_emb + pos_emb[None, :, :]).reshape(M, C)      # f32 residual stream

    layers = params["h"]
    n_layer = len(layers)

    # Only the first ln_1 is standalone; every other LN is fused into the
    # preceding projection epilogue.
    h = layernorm(x, layers[0]["ln1_g"], layers[0]["ln1_b"])            # bf16

    for li, layer in enumerate(layers):
        # --- attention: (ln1) -> qkv -> flash attn -> proj + residual + ln2 ---
        qkv = fused_linear(h, layer["attn_w"], bias=layer["attn_b"])    # (M, 3C)
        qkv = qkv.reshape(B, T, 3, H, D)      # free reshape, no transposes
        y = causal_flash_attention(qkv, H)                              # (B,T,C)
        x, h = fused_proj_residual_ln(
            y.reshape(M, C), layer["aproj_w"], layer["aproj_b"],
            x, layer["ln2_g"], layer["ln2_b"])                          # f32, bf16

        # --- MLP: (ln2) -> fc + GELU -> proj + residual + next LN ---
        hh = fused_linear(h, layer["fc_w"], bias=layer["fc_b"], gelu=True)
        if li + 1 < n_layer:
            g, b = layers[li + 1]["ln1_g"], layers[li + 1]["ln1_b"]
        else:
            g, b = params["lnf_g"], params["lnf_b"]
        x, h = fused_proj_residual_ln(
            hh, layer["mproj_w"], layer["mproj_b"], x, g, b)

    # h == ln_f(x) in bf16 (fused into the last mproj epilogue).
    logits = fused_linear(h, params["lm_head_w"], out_dtype=jnp.float32,
                          tm=1024, tn=1024)
    if logits.shape[-1] != V:
        logits = logits[:, :V]                 # drop vocab padding columns
    logits = logits.reshape(B, T, V)
    # TODO(synk): cross-entropy loss path (targets is None here, as in eval).
    return logits, None


# ----------------------------------------------------------------------------
# main
# ----------------------------------------------------------------------------

if __name__ == "__main__":
    # Small config consistent with GPTConfig's structure.
    cfg = dict(vocab_size=128, block_size=16, n_embd=32, n_layer=2, n_head=4)
    B, T = 2, 8

    key = jax.random.PRNGKey(0)
    pkey, ikey = jax.random.split(key)
    params = init_params(pkey, **cfg)
    idx = jax.random.randint(ikey, (B, T), 0, cfg["vocab_size"], dtype=jnp.int32)

    logits, loss = gpt_forward(params, idx)
    logits = jax.block_until_ready(logits)
    assert logits.shape == (B, T, cfg["vocab_size"])
    assert logits.dtype == jnp.float32
    assert bool(jnp.all(jnp.isfinite(logits)))
    print("KERNEL_OK")
</pallas_src>

<mosaic_0001>
module attributes {stable_mosaic.version = 11 : i64} {
  func.func @_layernorm_kernel(%arg0: i32, %arg1: memref<16x32xf32, #tpu.memory_space<vmem>>, %arg2: memref<1x32xf32, #tpu.memory_space<vmem>>, %arg3: memref<1x32xf32, #tpu.memory_space<vmem>>, %arg4: memref<16x32xbf16, #tpu.memory_space<vmem>>) attributes {dimension_semantics = [#tpu.dimension_semantics<parallel>], iteration_bounds = array<i64: 1>, scalar_prefetch = 0 : i64, scratch_operands = 0 : i64, tpu.core_type = #tpu.core_type<tc>, window_params = [{transform_indices = @transform_0, window_bounds = array<i64: 16, 32>}, {pipeline_mode = #tpu.pipeline_mode<synchronous>, transform_indices = @transform_1, window_bounds = array<i64: 1, 32>}, {pipeline_mode = #tpu.pipeline_mode<synchronous>, transform_indices = @transform_2, window_bounds = array<i64: 1, 32>}, {transform_indices = @transform_3, window_bounds = array<i64: 16, 32>}]} {
    %c0 = arith.constant 0 : index
    %c0_0 = arith.constant 0 : index
    %0 = vector.load %arg1[%c0, %c0_0] : memref<16x32xf32, #tpu.memory_space<vmem>>, vector<16x32xf32>
    %cst = arith.constant dense<0.000000e+00> : vector<16xf32>
    %1 = vector.multi_reduction <add>, %0, %cst [1] : vector<16x32xf32> to vector<16xf32>
    %2 = vector.shape_cast %1 : vector<16xf32> to vector<16x1xf32>
    %cst_1 = arith.constant 3.200000e+01 : f32
    %3 = vector.broadcast %cst_1 : f32 to vector<16x1xf32>
    %4 = arith.divf %2, %3 : vector<16x1xf32>
    %5 = vector.broadcast %4 : vector<16x1xf32> to vector<16x32xf32>
    %6 = arith.subf %0, %5 : vector<16x32xf32>
    %7 = arith.mulf %6, %6 : vector<16x32xf32>
    %cst_2 = arith.constant dense<0.000000e+00> : vector<16xf32>
    %8 = vector.multi_reduction <add>, %7, %cst_2 [1] : vector<16x32xf32> to vector<16xf32>
    %9 = vector.shape_cast %8 : vector<16xf32> to vector<16x1xf32>
    %cst_3 = arith.constant 3.200000e+01 : f32
    %10 = vector.broadcast %cst_3 : f32 to vector<16x1xf32>
    %11 = arith.divf %9, %10 : vector<16x1xf32>
    %cst_4 = arith.constant 9.99999974E-6 : f32
    %12 = vector.broadcast %cst_4 : f32 to vector<16x1xf32>
    %13 = arith.addf %11, %12 : vector<16x1xf32>
    %14 = math.rsqrt %13 : vector<16x1xf32>
    %15 = vector.broadcast %14 : vector<16x1xf32> to vector<16x32xf32>
    %16 = arith.mulf %6, %15 : vector<16x32xf32>
    %c0_5 = arith.constant 0 : index
    %c0_6 = arith.constant 0 : index
    %17 = vector.load %arg2[%c0_5, %c0_6] : memref<1x32xf32, #tpu.memory_space<vmem>>, vector<1x32xf32>
    %18 = vector.broadcast %17 : vector<1x32xf32> to vector<16x32xf32>
    %19 = arith.mulf %16, %18 : vector<16x32xf32>
    %c0_7 = arith.constant 0 : index
    %c0_8 = arith.constant 0 : index
    %20 = vector.load %arg3[%c0_7, %c0_8] : memref<1x32xf32, #tpu.memory_space<vmem>>, vector<1x32xf32>
    %21 = vector.broadcast %20 : vector<1x32xf32> to vector<16x32xf32>
    %22 = arith.addf %19, %21 : vector<16x32xf32>
    %23 = arith.truncf %22 : vector<16x32xf32> to vector<16x32xbf16>
    %c0_9 = arith.constant 0 : index
    %c0_10 = arith.constant 0 : index
    %24 = vector.load %arg4[%c0_9, %c0_10] : memref<16x32xbf16, #tpu.memory_space<vmem>>, vector<16x32xbf16>
    tpu.vector_store %arg4[%c0_9, %c0_10], %23 {strides = array<i32>} : memref<16x32xbf16, #tpu.memory_space<vmem>>, vector<16x32xbf16>,
    return
  }
  func.func @transform_0(%arg0: i32) -> (i32, i32) {
    %c0_i32 = arith.constant 0 : i32
    %c0_i32_0 = arith.constant 0 : i32
    return %arg0, %c0_i32 : i32, i32
  }
  func.func @transform_1(%arg0: i32) -> (i32, i32) {
    %c0_i32 = arith.constant 0 : i32
    %c0_i32_0 = arith.constant 0 : i32
    %c0_i32_1 = arith.constant 0 : i32
    return %c0_i32, %c0_i32_0 : i32, i32
  }
  func.func @transform_2(%arg0: i32) -> (i32, i32) {
    %c0_i32 = arith.constant 0 : i32
    %c0_i32_0 = arith.constant 0 : i32
    %c0_i32_1 = arith.constant 0 : i32
    return %c0_i32, %c0_i32_0 : i32, i32
  }
  func.func @transform_3(%arg0: i32) -> (i32, i32) {
    %c0_i32 = arith.constant 0 : i32
    %c0_i32_0 = arith.constant 0 : i32
    return %arg0, %c0_i32 : i32, i32
  }
}

</mosaic_0001>

<llo_original>
// kernel: tpu_custom_call.1
$region0: #{tpu_custom_call.1}
  #allocation0 [shape = 'u32[]', space=smem, size = 0x4, offset = 0x4, fixed_abs, tag = 'smem constant byte address 0x4 - core index']
  #allocation1 [shape = 'u32[144,128]{1,0:T(1,128)}', space=vmem, size = 0x12000, scoped, tag = 'internal scratch']
  %s0 = inlined_call_operand.hbm [shape: f32[16,32], index: 0, kind: input, shape index: {}]
  %s1 = inlined_call_operand.vmem [shape: f32[1,32], index: 1, kind: input, shape index: {}]
  %s2 = inlined_call_operand.vmem [shape: f32[1,32], index: 2, kind: input, shape index: {}]
  %s3 = inlined_call_operand.hbm [shape: bf16[16,32], index: 3, kind: output, shape index: {}]
  %s4 = sld [smem:[#allocation0]]
  $region26: #{tpu_custom_call.1} parent=0
    _
  %s6 = ssub.s32 1, %s4
  %s7 = scalar_select 0, %s6, %s4
  $region1: #{tpu_custom_call.1} parent=0
    #allocation2 [shape = 'u8[8192]{0}', space=vmem, size = 0x2000, scoped, tag = 'input window, operand 0, single buffered']
    #allocation3 [shape = 's32[1]{0}', space=sflag, size = 0x4, scoped, tag = 'scoped memory for tpu_custom_call.1']
    #allocation4 [shape = 's32[1]{0}', space=sflag, size = 0x4, scoped, tag = 'scoped memory for tpu_custom_call.1']
    #allocation5 [shape = 'u8[4096]{0}', space=vmem, size = 0x1000, scoped, tag = 'output window, operand 0, single buffered']
    %8 = vsyncpa [#allocation3], 0
    %9 = vsyncpa [#allocation4], 0
    // Predicated region
    $region2: #{tpu_custom_call.1} parent=1 // pred_check
      _
    $region3: #{tpu_custom_call.1} parent=1 // pred_check_branch
      %11 = sbr.rel (0) target = $region5
    $region4: #{tpu_custom_call.1} parent=1 // pred_region
      %s13 = ssub.s32 256, 256
      %14 = vsyncadd [#allocation3], %s13
      %s15 = sshll.u32 [#allocation2], 4
      %s16 = int_to_ptr.vmem [resolvable:$true] %s15
      %21 = dma.hbm_to_vmem [thread:$0]  %s0, 256, %s16, [#allocation3], 128, 128, 8
    $region5: #{tpu_custom_call.1} parent=1 // pred_fallthru
      _
    // Predicated region
    $region6: #{tpu_custom_call.1} parent=1 // pred_check
      _
    $region7: #{tpu_custom_call.1} parent=1 // pred_check_branch
      %23 = sbr.rel (0) target = $region9
    $region8: #{tpu_custom_call.1} parent=1 // pred_region
      _
    $region9: #{tpu_custom_call.1} parent=1 // pred_fallthru
      _
    // Predicated region
    $region10: #{tpu_custom_call.1} parent=1 // pred_check
      _
    $region11: #{tpu_custom_call.1} parent=1 // pred_check_branch
      %25 = sbr.rel (0) target = $region13
    $region12: #{tpu_custom_call.1} parent=1 // pred_region
      _
    $region13: #{tpu_custom_call.1} parent=1 // pred_fallthru
      _
    // Predicated region
    $region14: #{tpu_custom_call.1} parent=1 // pred_check
      _
    $region15: #{tpu_custom_call.1} parent=1 // pred_check_branch
      %27 = sbr.rel (0) target = $region17
    $region16: #{tpu_custom_call.1} parent=1 // pred_region
      %28 = dma.done [#allocation3], 256
    $region17: #{tpu_custom_call.1} parent=1 // pred_fallthru
      _
    %v29 = vld [vmem:[#allocation2] sm:$0xff]
    %v30 = vld [vmem:[#allocation2 + $0x8] sm:$0xff]
    %vm31 = vcmask 261120
    %v32 = vsel %vm31, %v29, 0.0
    %33 = vadd.xlane.f32.xlu0 %v32
    %v34 = vpop.xlane.xlu0 %33
    %v35 = vsel %vm31, %v30, 0.0
    %36 = vadd.xlane.f32.xlu0 %v35
    %v37 = vpop.xlane.xlu0 %36
    %v38 = vrcp.pop 32.0
    %v39 = vmul.f32 %v34, %v38
    %v40 = vmul.f32 %v37, %v38
    %v41 = vsub.f32 %v29, %v39
    %v42 = vsub.f32 %v30, %v40
    %v43 = vmul.f32 %v41, %v41
    %v44 = vmul.f32 %v42, %v42
    %v45 = vsel %vm31, %v43, 0.0
    %46 = vadd.xlane.f32.xlu0 %v45
    %v47 = vpop.xlane.xlu0 %46
    %v48 = vsel %vm31, %v44, 0.0
    %49 = vadd.xlane.f32.xlu0 %v48
    %v50 = vpop.xlane.xlu0 %49
    %v51 = vmul.f32 %v47, %v38
    %v52 = vmul.f32 %v50, %v38
    %v53 = vadd.f32 %v51, 1e-05
    %v54 = vadd.f32 %v52, 1e-05
    %v55 = vrsqrt.pop %v53
    %v56 = vrsqrt.pop %v54
    %v57 = vmul.f32 %v41, %v55
    %v58 = vmul.f32 %v42, %v56
    %v59 = vld [vmem:[%s1] sm:$0x1]
    %v61 = vlaneseq
    %v62 = vshrl.u32 %v61, 7
    %v63 = vsub.s32 0, %v62
    %v64 = vrot.slane %v59, %v63
    %v66 = vmul.f32 %v57, %v64
    %v67 = vmul.f32 %v58, %v64
    %v68 = vld [vmem:[%s2] sm:$0x1]
    %v70 = vlaneseq
    %v71 = vshrl.u32 %v70, 7
    %v72 = vsub.s32 0, %v71
    %v73 = vrot.slane %v68, %v72
    %v75 = vadd.f32 %v66, %v73
    %v76 = vadd.f32 %v67, %v73
    %v77 = vpack.c.bf16 %v76, %v75
    %v79 = vunpack.c.l.b16 %v77
    %v80 = vunpack.c.h.b16 %v77
    %v81 = vpack.c.b16 %v79, %v79
    %v82 = vpack.c.b16 %v80, %v80
    %vm85 = vcmask 257024
    %86 = vst.msk [vmem:[#allocation5] sm:$0xf] %vm85, %v81
    %87 = vst.msk [vmem:[#allocation5 + $0x4] sm:$0xf] %vm85, %v82
    // Predicated region
    $region18: #{tpu_custom_call.1} parent=1 // pred_check
      _
    $region19: #{tpu_custom_call.1} parent=1 // pred_check_branch
      %89 = sbr.rel (0) target = $region21
    $region20: #{tpu_custom_call.1} parent=1 // pred_region
      %s91 = ssub.s32 128, 128
      %92 = vsyncadd [#allocation4], %s91
      %s93 = sshll.u32 [#allocation5], 4
      %s94 = int_to_ptr.vmem [resolvable:$true] %s93
      %99 = dma.vmem_to_hbm [thread:$0]  %s94, 128, %s3, [#allocation4], 64, 64, 4
    $region21: #{tpu_custom_call.1} parent=1 // pred_fallthru
      _
    // Predicated region
    $region22: #{tpu_custom_call.1} parent=1 // pred_check
      _
    $region23: #{tpu_custom_call.1} parent=1 // pred_check_branch
      %101 = sbr.rel (0) target = $region25
    $region24: #{tpu_custom_call.1} parent=1 // pred_region
      %102 = dma.done [#allocation4], 128
    $region25: #{tpu_custom_call.1} parent=1 // pred_fallthru
      _
    %103 = vsyncpa [#allocation3], 1
    %104 = vsyncpa [#allocation4], 1

</llo_original>
